<compile_context>
chip_gen: v7x
topology: tpu7x:2x2x1
jax: 0.10.0
libtpu: 0.0.40
codegen_flags: <defaults>
</compile_context>

<pallas_src>
import functools

import jax
import jax.numpy as jnp
from jax import lax
from jax.experimental import pallas as pl
from jax.experimental.pallas import tpu as pltpu

F_IN, H1, H2, F_OUT = 21, 16, 8, 1

# dot_general dimension numbers: contract the minor dim of both operands
# (i.e. A @ B^T), the MXU-friendly "NT" form used by flash attention.
_NT = (((1,), (1,)), ((), ()))


def mlp_kernel(x_ref, w1_ref, b1_ref, w2_ref, b2_ref, w3_ref, b3_ref, o_ref):
    # x_ref: [T, 21] batch-major tile.  Weights are PyTorch-style [out, in],
    # biases [out, 1].  All activations below are feature-major [out, T].
    h = lax.dot_general(w1_ref[...], x_ref[...], _NT,
                        preferred_element_type=jnp.float32)        # [16, T]
    h = jnp.maximum(h + b1_ref[...], 0.0)
    h = jnp.dot(w2_ref[...], h, preferred_element_type=jnp.float32)  # [8, T]
    h = jnp.maximum(h + b2_ref[...], 0.0)
    o_ref[...] = (
        jnp.dot(w3_ref[...], h, preferred_element_type=jnp.float32) + b3_ref[...]
    )                                                               # [1, T] lane-dense


@functools.partial(jax.jit, static_argnames=("batch_tile",))
def net_forward(x, params, *, batch_tile=8192):
    """x: [B, 21] float32 -> [B, 1] float32 (same semantics as Net.forward)."""
    assert batch_tile % 128 == 0
    w1, b1, w2, b2, w3, b3 = params  # w*: [F_out, F_in], b*: [F_out, 1]
    B = x.shape[0]

    # One grid step per batch tile:
    #  * B <= batch_tile: a single block equal to the full batch (legal for any B).
    #  * B  > batch_tile: fixed lane-granular tiles; the trailing partial tile
    #    is handled by Pallas boundary masking.
    tile = B if B <= batch_tile else batch_tile
    num_tiles = pl.cdiv(B, tile)

    # Constant index_map -> fetched once, VMEM-resident across all batch tiles.
    resident = lambda a: pl.BlockSpec(a.shape, lambda i: (0, 0))

    flops = 2 * B * (F_IN * H1 + H1 * H2 + H2 * F_OUT)
    bytes_accessed = 4 * (
        B * (F_IN + F_OUT)
        + F_IN * H1 + H1 * H2 + H2 * F_OUT + H1 + H2 + F_OUT
    )

    out_t = pl.pallas_call(
        mlp_kernel,
        out_shape=jax.ShapeDtypeStruct((F_OUT, B), jnp.float32),
        grid=(num_tiles,),
        in_specs=[
            pl.BlockSpec((tile, F_IN), lambda i: (i, 0)),
            resident(w1), resident(b1),
            resident(w2), resident(b2),
            resident(w3), resident(b3),
        ],
        out_specs=pl.BlockSpec((F_OUT, tile), lambda i: (0, i)),
        compiler_params=pltpu.CompilerParams(
            # Batch tiles are independent -> shard the grid across TensorCores.
            dimension_semantics=("parallel",),
            vmem_limit_bytes=32 * 1024 * 1024,
        ),
        cost_estimate=pl.CostEstimate(
            flops=flops, transcendentals=0, bytes_accessed=bytes_accessed
        ),
    )(x, w1, b1, w2, b2, w3, b3)

    return out_t.T  # [B, 1]


def init_params(key):
    """Deterministic init mimicking nn.Linear default (uniform +/- 1/sqrt(fan_in)).

    Weights stored PyTorch-style [F_out, F_in]; biases as [F_out, 1].
    """
    dims = [(F_IN, H1), (H1, H2), (H2, F_OUT)]
    params = []
    for fan_in, fan_out in dims:
        key, kw, kb = jax.random.split(key, 3)
        bound = 1.0 / jnp.sqrt(fan_in)
        w = jax.random.uniform(
            kw, (fan_out, fan_in), jnp.float32, minval=-bound, maxval=bound
        )
        b = jax.random.uniform(
            kb, (fan_out, 1), jnp.float32, minval=-bound, maxval=bound
        )
        params += [w, b]
    return tuple(params)


def reference_forward(x, params):
    w1, b1, w2, b2, w3, b3 = params
    h1 = jnp.maximum(x @ w1.T + b1[:, 0], 0.0)
    h2 = jnp.maximum(h1 @ w2.T + b2[:, 0], 0.0)
    return h2 @ w3.T + b3[:, 0]


if __name__ == "__main__":
    key = jax.random.PRNGKey(0)
    key, kx, kx2 = jax.random.split(key, 3)
    params = init_params(key)

    # Tiny batch: single block equal to the full (odd-sized) batch.
    B = 8
    x = jax.random.normal(kx, (B, F_IN), dtype=jnp.float32)
    out = jax.block_until_ready(net_forward(x, params))
    ref = reference_forward(x, params)
    assert out.shape == (B, 1)
    assert jnp.allclose(out, ref, atol=1e-5, rtol=1e-5)

    # Multi-tile batch with a ragged tail: exercises the pipelined grid and
    # partial input/output blocks (300 = 2 full 128-tiles + 44-row tail).
    B2 = 300
    x2 = jax.random.normal(kx2, (B2, F_IN), dtype=jnp.float32)
    out2 = jax.block_until_ready(net_forward(x2, params, batch_tile=128))
    ref2 = reference_forward(x2, params)
    assert out2.shape == (B2, 1)
    assert jnp.allclose(out2, ref2, atol=1e-5, rtol=1e-5)

    print("KERNEL_OK")
</pallas_src>

<mosaic_0001>
module attributes {stable_mosaic.version = 11 : i64} {
  func.func @mlp_kernel(%arg0: i32, %arg1: memref<8x21xf32, #tpu.memory_space<vmem>>, %arg2: memref<16x21xf32, #tpu.memory_space<vmem>>, %arg3: memref<16x1xf32, #tpu.memory_space<vmem>>, %arg4: memref<8x16xf32, #tpu.memory_space<vmem>>, %arg5: memref<8x1xf32, #tpu.memory_space<vmem>>, %arg6: memref<1x8xf32, #tpu.memory_space<vmem>>, %arg7: memref<1x1xf32, #tpu.memory_space<vmem>>, %arg8: memref<1x8xf32, #tpu.memory_space<vmem>>) attributes {dimension_semantics = [#tpu.dimension_semantics<parallel>], iteration_bounds = array<i64: 1>, scalar_prefetch = 0 : i64, scratch_operands = 0 : i64, tpu.core_type = #tpu.core_type<tc>, window_params = [{transform_indices = @transform_0, window_bounds = array<i64: 8, 21>}, {pipeline_mode = #tpu.pipeline_mode<synchronous>, transform_indices = @transform_1, window_bounds = array<i64: 16, 21>}, {pipeline_mode = #tpu.pipeline_mode<synchronous>, transform_indices = @transform_2, window_bounds = array<i64: 16, 1>}, {pipeline_mode = #tpu.pipeline_mode<synchronous>, transform_indices = @transform_3, window_bounds = array<i64: 8, 16>}, {pipeline_mode = #tpu.pipeline_mode<synchronous>, transform_indices = @transform_4, window_bounds = array<i64: 8, 1>}, {pipeline_mode = #tpu.pipeline_mode<synchronous>, transform_indices = @transform_5, window_bounds = array<i64: 1, 8>}, {pipeline_mode = #tpu.pipeline_mode<synchronous>, transform_indices = @transform_6, window_bounds = array<i64: 1, 1>}, {transform_indices = @transform_7, window_bounds = array<i64: 1, 8>}]} {
    %c0 = arith.constant 0 : index
    %c0_0 = arith.constant 0 : index
    %0 = vector.load %arg2[%c0, %c0_0] : memref<16x21xf32, #tpu.memory_space<vmem>>, vector<16x21xf32>
    %c0_1 = arith.constant 0 : index
    %c0_2 = arith.constant 0 : index
    %1 = vector.load %arg1[%c0_1, %c0_2] : memref<8x21xf32, #tpu.memory_space<vmem>>, vector<8x21xf32>
    %cst = arith.constant dense<0.000000e+00> : vector<16x8xf32>
    %2 = tpu.matmul %0, %1, %cst {dimension_numbers = #tpu.dot_dimension_numbers<[1], [1], [0], [0], [0, 0, 1, 0], [], []>} : vector<16x21xf32>, vector<8x21xf32>, vector<16x8xf32> -> vector<16x8xf32>
    %c0_3 = arith.constant 0 : index
    %c0_4 = arith.constant 0 : index
    %3 = vector.load %arg3[%c0_3, %c0_4] : memref<16x1xf32, #tpu.memory_space<vmem>>, vector<16x1xf32>
    %4 = vector.broadcast %3 : vector<16x1xf32> to vector<16x8xf32>
    %5 = arith.addf %2, %4 : vector<16x8xf32>
    %cst_5 = arith.constant 0.000000e+00 : f32
    %6 = vector.broadcast %cst_5 : f32 to vector<16x8xf32>
    %7 = arith.maximumf %5, %6 : vector<16x8xf32>
    %c0_6 = arith.constant 0 : index
    %c0_7 = arith.constant 0 : index
    %8 = vector.load %arg4[%c0_6, %c0_7] : memref<8x16xf32, #tpu.memory_space<vmem>>, vector<8x16xf32>
    %cst_8 = arith.constant dense<0.000000e+00> : vector<8x8xf32>
    %9 = tpu.matmul %8, %7, %cst_8 {dimension_numbers = #tpu.dot_dimension_numbers<[1], [0], [0], [1], [0, 0, 1, 1], [], []>} : vector<8x16xf32>, vector<16x8xf32>, vector<8x8xf32> -> vector<8x8xf32>
    %c0_9 = arith.constant 0 : index
    %c0_10 = arith.constant 0 : index
    %10 = vector.load %arg5[%c0_9, %c0_10] : memref<8x1xf32, #tpu.memory_space<vmem>>, vector<8x1xf32>
    %11 = vector.broadcast %10 : vector<8x1xf32> to vector<8x8xf32>
    %12 = arith.addf %9, %11 : vector<8x8xf32>
    %cst_11 = arith.constant 0.000000e+00 : f32
    %13 = vector.broadcast %cst_11 : f32 to vector<8x8xf32>
    %14 = arith.maximumf %12, %13 : vector<8x8xf32>
    %c0_12 = arith.constant 0 : index
    %c0_13 = arith.constant 0 : index
    %15 = vector.load %arg6[%c0_12, %c0_13] : memref<1x8xf32, #tpu.memory_space<vmem>>, vector<1x8xf32>
    %cst_14 = arith.constant dense<0.000000e+00> : vector<1x8xf32>
    %16 = tpu.matmul %15, %14, %cst_14 {dimension_numbers = #tpu.dot_dimension_numbers<[1], [0], [0], [1], [0, 0, 1, 1], [], []>} : vector<1x8xf32>, vector<8x8xf32>, vector<1x8xf32> -> vector<1x8xf32>
    %c0_15 = arith.constant 0 : index
    %c0_16 = arith.constant 0 : index
    %17 = vector.load %arg7[%c0_15, %c0_16] : memref<1x1xf32, #tpu.memory_space<vmem>>, vector<1x1xf32>
    %18 = vector.broadcast %17 : vector<1x1xf32> to vector<1x8xf32>
    %19 = arith.addf %16, %18 : vector<1x8xf32>
    %c0_17 = arith.constant 0 : index
    %c0_18 = arith.constant 0 : index
    %20 = vector.load %arg8[%c0_17, %c0_18] : memref<1x8xf32, #tpu.memory_space<vmem>>, vector<1x8xf32>
    tpu.vector_store %arg8[%c0_17, %c0_18], %19 {strides = array<i32>} : memref<1x8xf32, #tpu.memory_space<vmem>>, vector<1x8xf32>,
    return
  }
  func.func @transform_0(%arg0: i32) -> (i32, i32) {
    %c0_i32 = arith.constant 0 : i32
    %c0_i32_0 = arith.constant 0 : i32
    return %arg0, %c0_i32 : i32, i32
  }
  func.func @transform_1(%arg0: i32) -> (i32, i32) {
    %c0_i32 = arith.constant 0 : i32
    %c0_i32_0 = arith.constant 0 : i32
    %c0_i32_1 = arith.constant 0 : i32
    return %c0_i32, %c0_i32_0 : i32, i32
  }
  func.func @transform_2(%arg0: i32) -> (i32, i32) {
    %c0_i32 = arith.constant 0 : i32
    %c0_i32_0 = arith.constant 0 : i32
    %c0_i32_1 = arith.constant 0 : i32
    return %c0_i32, %c0_i32_0 : i32, i32
  }
  func.func @transform_3(%arg0: i32) -> (i32, i32) {
    %c0_i32 = arith.constant 0 : i32
    %c0_i32_0 = arith.constant 0 : i32
    %c0_i32_1 = arith.constant 0 : i32
    return %c0_i32, %c0_i32_0 : i32, i32
  }
  func.func @transform_4(%arg0: i32) -> (i32, i32) {
    %c0_i32 = arith.constant 0 : i32
    %c0_i32_0 = arith.constant 0 : i32
    %c0_i32_1 = arith.constant 0 : i32
    return %c0_i32, %c0_i32_0 : i32, i32
  }
  func.func @transform_5(%arg0: i32) -> (i32, i32) {
    %c0_i32 = arith.constant 0 : i32
    %c0_i32_0 = arith.constant 0 : i32
    %c0_i32_1 = arith.constant 0 : i32
    return %c0_i32, %c0_i32_0 : i32, i32
  }
  func.func @transform_6(%arg0: i32) -> (i32, i32) {
    %c0_i32 = arith.constant 0 : i32
    %c0_i32_0 = arith.constant 0 : i32
    %c0_i32_1 = arith.constant 0 : i32
    return %c0_i32, %c0_i32_0 : i32, i32
  }
  func.func @transform_7(%arg0: i32) -> (i32, i32) {
    %c0_i32 = arith.constant 0 : i32
    %c0_i32_0 = arith.constant 0 : i32
    return %c0_i32, %arg0 : i32, i32
  }
}

</mosaic_0001>

<llo_original>
// kernel: net_forward.1
$region0: #{net_forward.1}
  #allocation0 [shape = 'u32[]', space=smem, size = 0x4, offset = 0x4, fixed_abs, tag = 'smem constant byte address 0x4 - core index']
  #allocation1 [shape = 'u32[144,128]{1,0:T(1,128)}', space=vmem, size = 0x12000, scoped, tag = 'internal scratch']
  #allocation2 [shape = 'f32[1,1]{1,0:T(1,128)S(1)}', space=vmem, size = 0x200, scoped, tag = 'scoped memory for net_forward.1']
  %s0 = inlined_call_operand.vmem [shape: f32[8,21], index: 0, kind: input, shape index: {}]
  %s1 = inlined_call_operand.vmem [shape: f32[16,21], index: 1, kind: input, shape index: {}]
  %s2 = inlined_call_operand.vmem [shape: f32[16,1], index: 2, kind: input, shape index: {}]
  %s3 = inlined_call_operand.vmem [shape: f32[8,16], index: 3, kind: input, shape index: {}]
  %s4 = inlined_call_operand.vmem [shape: f32[8,1], index: 4, kind: input, shape index: {}]
  %s5 = inlined_call_operand.vmem [shape: f32[1,8], index: 5, kind: input, shape index: {}]
  %s6 = inlined_call_operand.<no memory space> [shape: f32[1,1], index: 6, kind: input, shape index: {}]
  %s7 = inlined_call_operand.hbm [shape: f32[1,8], index: 7, kind: output, shape index: {}]
  %s8 = sld [smem:[#allocation0]]
  $region38: #{net_forward.1} parent=0
    _
  %s10 = ssub.s32 1, %s8
  %s11 = scalar_select 0, %s10, %s8
  %v12 = vstv %s6
  %13 = vst [vmem:[#allocation2] sm:$0x1] %v12
  $region1: #{net_forward.1} parent=0
    #allocation3 [shape = 'u8[512]{0}', space=vmem, size = 0x400, scoped, tag = 'output window, operand 0, single buffered']
    #allocation4 [shape = 's32[1]{0}', space=sflag, size = 0x4, scoped, tag = 'scoped memory for net_forward.1']
    %14 = vsyncpa [#allocation4], 0
    // Predicated region
    $region2: #{net_forward.1} parent=1 // pred_check
      _
    $region3: #{net_forward.1} parent=1 // pred_check_branch
      %16 = sbr.rel (0) target = $region5
    $region4: #{net_forward.1} parent=1 // pred_region
      _
    $region5: #{net_forward.1} parent=1 // pred_fallthru
      _
    // Predicated region
    $region6: #{net_forward.1} parent=1 // pred_check
      _
    $region7: #{net_forward.1} parent=1 // pred_check_branch
      %18 = sbr.rel (0) target = $region9
    $region8: #{net_forward.1} parent=1 // pred_region
      _
    $region9: #{net_forward.1} parent=1 // pred_fallthru
      _
    // Predicated region
    $region10: #{net_forward.1} parent=1 // pred_check
      _
    $region11: #{net_forward.1} parent=1 // pred_check_branch
      %20 = sbr.rel (0) target = $region13
    $region12: #{net_forward.1} parent=1 // pred_region
      _
    $region13: #{net_forward.1} parent=1 // pred_fallthru
      _
    // Predicated region
    $region14: #{net_forward.1} parent=1 // pred_check
      _
    $region15: #{net_forward.1} parent=1 // pred_check_branch
      %22 = sbr.rel (0) target = $region17
    $region16: #{net_forward.1} parent=1 // pred_region
      _
    $region17: #{net_forward.1} parent=1 // pred_fallthru
      _
    // Predicated region
    $region18: #{net_forward.1} parent=1 // pred_check
      _
    $region19: #{net_forward.1} parent=1 // pred_check_branch
      %24 = sbr.rel (0) target = $region21
    $region20: #{net_forward.1} parent=1 // pred_region
      _
    $region21: #{net_forward.1} parent=1 // pred_fallthru
      _
    // Predicated region
    $region22: #{net_forward.1} parent=1 // pred_check
      _
    $region23: #{net_forward.1} parent=1 // pred_check_branch
      %26 = sbr.rel (0) target = $region25
    $region24: #{net_forward.1} parent=1 // pred_region
      _
    $region25: #{net_forward.1} parent=1 // pred_fallthru
      _
    // Predicated region
    $region26: #{net_forward.1} parent=1 // pred_check
      _
    $region27: #{net_forward.1} parent=1 // pred_check_branch
      %28 = sbr.rel (0) target = $region29
    $region28: #{net_forward.1} parent=1 // pred_region
      _
    $region29: #{net_forward.1} parent=1 // pred_fallthru
      _
    %v29 = vld [vmem:[%s1] sm:$0xff]
    %v30 = vld [vmem:[%s1 + $0x8] sm:$0xff]
    %v31 = vld [vmem:[%s0] sm:$0xff]
    %v32 = vld [vmem:[%s2] sm:$0xff]
    %v33 = vld [vmem:[%s2 + $0x8] sm:$0xff]
    %35 = vset.pattern.permute.xlu0 0
    %36 = vperm.xlu0 %35, %v32
    %v37 = vpop.permute.xlu0 %36
    %40 = vset.pattern.permute.xlu0 0
    %41 = vperm.xlu0 %40, %v33
    %v42 = vpop.permute.xlu0 %41
    %vm44 = vcmask 171008
    %v46 = vsel %vm44, %v29, 0
    %v49 = vsel %vm44, %v30, 0
    %v52 = vsel %vm44, %v31, 0
    %54 = vmatprep.subr.mxu0 0.0
    %55 = vmatpush1.xpose.msra.mxu0 %v52
    %56 = vmatprep.subr.mxu0 0.0
    %57 = vmatpush1.xpose.msra.mxu0 0.0
    %58 = vmatprep.subr.mxu0 0.0
    %59 = vmatpush1.xpose.msra.mxu0 0.0
    %60 = vmatprep.subr.mxu0 0.0
    %61 = vmatpush1.xpose.msra.mxu0 0.0
    %62 = vmatprep.subr.mxu0 0.0
    %63 = vmatpush1.xpose.msra.mxu0 0.0
    %64 = vmatprep.subr.mxu0 0.0
    %65 = vmatpush1.xpose.msra.mxu0 0.0
    %66 = vmatprep.subr.mxu0 0.0
    %67 = vmatpush1.xpose.msra.mxu0 0.0
    %68 = vmatprep.subr.mxu0 0.0
    %69 = vmatpush1.xpose.msra.mxu0 0.0
    %70 = vmatprep.subr.mxu0 0.0
    %71 = vmatpush1.xpose.msra.mxu0 0.0
    %72 = vmatprep.subr.mxu0 0.0
    %73 = vmatpush1.xpose.msra.mxu0 0.0
    %74 = vmatprep.subr.mxu0 0.0
    %75 = vmatpush1.xpose.msra.mxu0 0.0
    %76 = vmatprep.subr.mxu0 0.0
    %77 = vmatpush1.xpose.msra.mxu0 0.0
    %78 = vmatprep.subr.mxu0 0.0
    %79 = vmatpush1.xpose.msra.mxu0 0.0
    %80 = vmatprep.subr.mxu0 0.0
    %81 = vmatpush1.xpose.msra.mxu0 0.0
    %82 = vmatprep.subr.mxu0 0.0
    %83 = vmatpush1.xpose.msra.mxu0 0.0
    %84 = vmatprep.subr.mxu0 0.0
    %85 = vmatpush1.xpose.msra.mxu0 0.0
    %86 = vmatprep.subr.mxu0 0.0
    %87 = vmatpush1.xpose.msra.mxu0 0.0
    %88 = vmatprep.subr.mxu0 0.0
    %89 = vmatpush1.xpose.msra.mxu0 0.0
    %90 = vmatprep.subr.mxu0 0.0
    %91 = vmatpush1.xpose.msra.mxu0 0.0
    %92 = vmatprep.subr.mxu0 0.0
    %93 = vmatpush1.xpose.msra.mxu0 0.0
    %94 = vmatprep.subr.mxu0 0.0
    %95 = vmatpush1.xpose.msra.mxu0 0.0
    %96 = vmatprep.subr.mxu0 0.0
    %97 = vmatpush1.xpose.msra.mxu0 0.0
    %98 = vmatprep.subr.mxu0 0.0
    %99 = vmatpush1.xpose.msra.mxu0 0.0
    %100 = vmatprep.subr.mxu0 0.0
    %101 = vmatpush1.xpose.msra.mxu0 0.0
    %102 = vmatprep.subr.mxu0 0.0
    %103 = vmatpush1.xpose.msra.mxu0 0.0
    %104 = vmatprep.subr.mxu0 0.0
    %105 = vmatpush1.xpose.msra.mxu0 0.0
    %106 = vmatprep.subr.mxu0 0.0
    %107 = vmatpush1.xpose.msra.mxu0 0.0
    %108 = vmatprep.subr.mxu0 0.0
    %109 = vmatpush1.xpose.msra.mxu0 0.0
    %110 = vmatprep.subr.mxu0 0.0
    %111 = vmatpush1.xpose.msra.mxu0 0.0
    %112 = vmatprep.subr.mxu0 0.0
    %113 = vmatpush1.xpose.msra.mxu0 0.0
    %114 = vmatprep.subr.mxu0 0.0
    %115 = vmatpush1.xpose.msra.mxu0 0.0
    %116 = vmatprep.subr.mxu0 0.0
    %117 = vmatpush1.xpose.msra.mxu0 0.0
    %118 = vmatprep.mubr.f32.mxu0 0.0
    %119 = vmatmul.mubr.f32.gmra.mrb[0].mxu0 %v46
    %v120 = vpop.f32.mrb[0].mxu0
    %v121 = vadd.f32 %v37, %v120
    %v122 = vpop.f32.mrb[0].mxu0
    %123 = vmatprep.mubr.f32.mxu0 0.0
    %124 = vmatmul.mubr.f32.gmra.mrb[0].mxu0 %v49
    %v125 = vpop.f32.mrb[0].mxu0
    %v126 = vadd.f32 %v42, %v125
    %v127 = vpop.f32.mrb[0].mxu0
    %128 = vdwg.mxu0
    %v129 = vmax.f32 %v121, 0.0
    %v130 = vmax.f32 %v126, 0.0
    %v131 = vld [vmem:[%s3] sm:$0xff]
    %v132 = vld [vmem:[%s4] sm:$0xff]
    %134 = vset.pattern.permute.xlu0 0
    %135 = vperm.xlu0 %134, %v132
    %v136 = vpop.permute.xlu0 %135
    %vm138 = vcmask 130048
    %v140 = vsel %vm138, %v131, 0
    %142 = vmatprep.subr.mxu0 0.0
    %143 = vmatpush1.msra.mxu0 %v129
    %144 = vmatprep.subr.mxu0 0.0
    %145 = vmatpush1.msra.mxu0 %v130
    %146 = vmatprep.subr.mxu0 0.0
    %147 = vmatpush1.msra.mxu0 0.0
    %148 = vmatprep.subr.mxu0 0.0
    %149 = vmatpush1.msra.mxu0 0.0
    %150 = vmatprep.subr.mxu0 0.0
    %151 = vmatpush1.msra.mxu0 0.0
    %152 = vmatprep.subr.mxu0 0.0
    %153 = vmatpush1.msra.mxu0 0.0
    %154 = vmatprep.subr.mxu0 0.0
    %155 = vmatpush1.msra.mxu0 0.0
    %156 = vmatprep.subr.mxu0 0.0
    %157 = vmatpush1.msra.mxu0 0.0
    %158 = vmatprep.subr.mxu0 0.0
    %159 = vmatpush1.msra.mxu0 0.0
    %160 = vmatprep.subr.mxu0 0.0
    %161 = vmatpush1.msra.mxu0 0.0
    %162 = vmatprep.subr.mxu0 0.0
    %163 = vmatpush1.msra.mxu0 0.0
    %164 = vmatprep.subr.mxu0 0.0
    %165 = vmatpush1.msra.mxu0 0.0
    %166 = vmatprep.subr.mxu0 0.0
    %167 = vmatpush1.msra.mxu0 0.0
    %168 = vmatprep.subr.mxu0 0.0
    %169 = vmatpush1.msra.mxu0 0.0
    %170 = vmatprep.subr.mxu0 0.0
    %171 = vmatpush1.msra.mxu0 0.0
    %172 = vmatprep.subr.mxu0 0.0
    %173 = vmatpush1.msra.mxu0 0.0
    %174 = vmatprep.subr.mxu0 0.0
    %175 = vmatpush1.msra.mxu0 0.0
    %176 = vmatprep.subr.mxu0 0.0
    %177 = vmatpush1.msra.mxu0 0.0
    %178 = vmatprep.subr.mxu0 0.0
    %179 = vmatpush1.msra.mxu0 0.0
    %180 = vmatprep.subr.mxu0 0.0
    %181 = vmatpush1.msra.mxu0 0.0
    %182 = vmatprep.subr.mxu0 0.0
    %183 = vmatpush1.msra.mxu0 0.0
    %184 = vmatprep.subr.mxu0 0.0
    %185 = vmatpush1.msra.mxu0 0.0
    %186 = vmatprep.subr.mxu0 0.0
    %187 = vmatpush1.msra.mxu0 0.0
    %188 = vmatprep.subr.mxu0 0.0
    %189 = vmatpush1.msra.mxu0 0.0
    %190 = vmatprep.subr.mxu0 0.0
    %191 = vmatpush1.msra.mxu0 0.0
    %192 = vmatprep.subr.mxu0 0.0
    %193 = vmatpush1.msra.mxu0 0.0
    %194 = vmatprep.subr.mxu0 0.0
    %195 = vmatpush1.msra.mxu0 0.0
    %196 = vmatprep.subr.mxu0 0.0
    %197 = vmatpush1.msra.mxu0 0.0
    %198 = vmatprep.subr.mxu0 0.0
    %199 = vmatpush1.msra.mxu0 0.0
    %200 = vmatprep.subr.mxu0 0.0
    %201 = vmatpush1.msra.mxu0 0.0
    %202 = vmatprep.subr.mxu0 0.0
    %203 = vmatpush1.msra.mxu0 0.0
    %204 = vmatprep.subr.mxu0 0.0
    %205 = vmatpush1.msra.mxu0 0.0
    %206 = vmatprep.mubr.f32.mxu0 0.0
    %207 = vmatmul.mubr.f32.gmra.mrb[0].mxu0 %v140
    %v208 = vpop.f32.mrb[0].mxu0
    %v209 = vadd.f32 %v136, %v208
    %v210 = vpop.f32.mrb[0].mxu0
    %211 = vdwg.mxu0
    %v212 = vmax.f32 %v209, 0.0
    %v213 = vld [vmem:[%s5] sm:$0x1]
    %v214 = vld [vmem:[#allocation2] sm:$0x1]
    %216 = vset.pattern.permute.xlu0 0
    %217 = vperm.xlu0 %216, %v214
    %v218 = vpop.permute.xlu0 %217
    %v220 = vlaneseq
    %v221 = vshrl.u32 %v220, 7
    %v222 = vsub.s32 0, %v221
    %v223 = vrot.slane %v218, %v222
    %vm224 = vcmask 64512
    %v226 = vsel %vm224, %v213, 0
    %228 = vmatprep.subr.mxu0 0.0
    %229 = vmatpush1.msra.mxu0 %v212
    %230 = vmatprep.subr.mxu0 0.0
    %231 = vmatpush1.msra.mxu0 0.0
    %232 = vmatprep.subr.mxu0 0.0
    %233 = vmatpush1.msra.mxu0 0.0
    %234 = vmatprep.subr.mxu0 0.0
    %235 = vmatpush1.msra.mxu0 0.0
    %236 = vmatprep.subr.mxu0 0.0
    %237 = vmatpush1.msra.mxu0 0.0
    %238 = vmatprep.subr.mxu0 0.0
    %239 = vmatpush1.msra.mxu0 0.0
    %240 = vmatprep.subr.mxu0 0.0
    %241 = vmatpush1.msra.mxu0 0.0
    %242 = vmatprep.subr.mxu0 0.0
    %243 = vmatpush1.msra.mxu0 0.0
    %244 = vmatprep.subr.mxu0 0.0
    %245 = vmatpush1.msra.mxu0 0.0
    %246 = vmatprep.subr.mxu0 0.0
    %247 = vmatpush1.msra.mxu0 0.0
    %248 = vmatprep.subr.mxu0 0.0
    %249 = vmatpush1.msra.mxu0 0.0
    %250 = vmatprep.subr.mxu0 0.0
    %251 = vmatpush1.msra.mxu0 0.0
    %252 = vmatprep.subr.mxu0 0.0
    %253 = vmatpush1.msra.mxu0 0.0
    %254 = vmatprep.subr.mxu0 0.0
    %255 = vmatpush1.msra.mxu0 0.0
    %256 = vmatprep.subr.mxu0 0.0
    %257 = vmatpush1.msra.mxu0 0.0
    %258 = vmatprep.subr.mxu0 0.0
    %259 = vmatpush1.msra.mxu0 0.0
    %260 = vmatprep.subr.mxu0 0.0
    %261 = vmatpush1.msra.mxu0 0.0
    %262 = vmatprep.subr.mxu0 0.0
    %263 = vmatpush1.msra.mxu0 0.0
    %264 = vmatprep.subr.mxu0 0.0
    %265 = vmatpush1.msra.mxu0 0.0
    %266 = vmatprep.subr.mxu0 0.0
    %267 = vmatpush1.msra.mxu0 0.0
    %268 = vmatprep.subr.mxu0 0.0
    %269 = vmatpush1.msra.mxu0 0.0
    %270 = vmatprep.subr.mxu0 0.0
    %271 = vmatpush1.msra.mxu0 0.0
    %272 = vmatprep.subr.mxu0 0.0
    %273 = vmatpush1.msra.mxu0 0.0
    %274 = vmatprep.subr.mxu0 0.0
    %275 = vmatpush1.msra.mxu0 0.0
    %276 = vmatprep.subr.mxu0 0.0
    %277 = vmatpush1.msra.mxu0 0.0
    %278 = vmatprep.subr.mxu0 0.0
    %279 = vmatpush1.msra.mxu0 0.0
    %280 = vmatprep.subr.mxu0 0.0
    %281 = vmatpush1.msra.mxu0 0.0
    %282 = vmatprep.subr.mxu0 0.0
    %283 = vmatpush1.msra.mxu0 0.0
    %284 = vmatprep.subr.mxu0 0.0
    %285 = vmatpush1.msra.mxu0 0.0
    %286 = vmatprep.subr.mxu0 0.0
    %287 = vmatpush1.msra.mxu0 0.0
    %288 = vmatprep.subr.mxu0 0.0
    %289 = vmatpush1.msra.mxu0 0.0
    %290 = vmatprep.subr.mxu0 0.0
    %291 = vmatpush1.msra.mxu0 0.0
    %292 = vmatprep.mubr.f32.mxu0 0.0
    %293 = vmatmul.mubr.f32.gmra.mrb[0].mxu0 %v226
    %v294 = vpop.f32.mrb[0].mxu0
    %v295 = vadd.f32 %v223, %v294
    %v296 = vpop.f32.mrb[0].mxu0
    %297 = vdwg.mxu0
    %vm298 = vcmask 57344
    %299 = vst.msk [vmem:[#allocation3] sm:$0x1] %vm298, %v295
    // Predicated region
    $region30: #{net_forward.1} parent=1 // pred_check
      _
    $region31: #{net_forward.1} parent=1 // pred_check_branch
      %301 = sbr.rel (0) target = $region33
    $region32: #{net_forward.1} parent=1 // pred_region
      %s303 = ssub.s32 16, 16
      %304 = vsyncadd [#allocation4], %s303
      %s306 = sshll.u32 [#allocation3], 4
      %s307 = int_to_ptr.vmem [resolvable:$true] %s306
      %309 = dma.vmem_to_hbm [thread:$0]  %s307, 16, %s7, [#allocation4]
    $region33: #{net_forward.1} parent=1 // pred_fallthru
      _
    // Predicated region
    $region34: #{net_forward.1} parent=1 // pred_check
      _
    $region35: #{net_forward.1} parent=1 // pred_check_branch
      %311 = sbr.rel (0) target = $region37
    $region36: #{net_forward.1} parent=1 // pred_region
      %312 = dma.done [#allocation4], 16
    $region37: #{net_forward.1} parent=1 // pred_fallthru
      _
    %313 = vsyncpa [#allocation4], 1

</llo_original>
